<compile_context>
chip_gen: v7x
topology: tpu7x:2x2x1
jax: 0.10.0
libtpu: 0.0.40
codegen_flags: <defaults>
</compile_context>

<pallas_src>
import functools

import jax
import jax.numpy as jnp
from jax.experimental import pallas as pl
from jax.experimental.pallas import tpu as pltpu

_NEG = -1e30       # finite "-inf" so padded lanes never create inf-inf NaNs
_LANE = 128


def _context_kernel(x_ref, wm_ref, w1_ref, w2_ref, y_ref,
                    m_sc, l_sc, ctx_sc, *, tile_hw, hw_actual, need_mask):
    t = pl.program_id(1)

    @pl.when(t == 0)
    def _():
        m_sc[...] = jnp.full_like(m_sc, _NEG)
        l_sc[...] = jnp.zeros_like(l_sc)
        ctx_sc[...] = jnp.zeros_like(ctx_sc)

    x = x_ref[0].astype(jnp.float32)          # (C, tile_hw), upcast at vreg level
    wm = wm_ref[...]                          # (C, 1)

    # conv_mask (1x1 conv, C->1) as a VPU broadcast-mul + sublane reduce.
    # C is small here; an M=1 matmul would waste >99% of the MXU.
    logits = jnp.sum(wm * x, axis=0, keepdims=True)          # (1, tile_hw)
    if need_mask:
        col = jax.lax.broadcasted_iota(jnp.int32, logits.shape, 1) + t * tile_hw
        logits = jnp.where(col < hw_actual, logits, _NEG)

    # Online softmax + weighted spatial pooling (no mask transpose, no N=1
    # matmul): accumulate unnormalized context, defer 1/sum to the finalize.
    tile_max = jnp.max(logits, axis=-1, keepdims=True)        # (1, 1)
    m_new = jnp.maximum(m_sc[...], tile_max)
    alpha = jnp.exp(m_sc[...] - m_new)                        # (1, 1)
    e = jnp.exp(logits - m_new)                               # (1, tile_hw)
    l_sc[...] = alpha * l_sc[...] + jnp.sum(e, axis=-1, keepdims=True)
    ctx_sc[...] = alpha * ctx_sc[...] + jnp.sum(x * e, axis=-1, keepdims=True)
    m_sc[...] = m_new

    @pl.when(t == pl.num_programs(1) - 1)
    def _():
        context = ctx_sc[...] / l_sc[...]                     # (C, 1), exact norm
        # channel_add_conv: 1x1 conv -> LeakyReLU(0.2) -> 1x1 conv on (C,1).
        y = jnp.dot(w1_ref[...], context, preferred_element_type=jnp.float32)
        y = jnp.where(y >= 0, y, 0.2 * y)
        y = jnp.dot(w2_ref[...], y, preferred_element_type=jnp.float32)
        y_ref[0] = y                                          # (C, 1) f32


def _residual_add_kernel(x_ref, y_ref, o_ref):
    x = x_ref[0].astype(jnp.float32)                          # (C, tile_hw)
    o_ref[0] = (x + y_ref[0]).astype(o_ref.dtype)             # broadcast (C,1)


def context_block(x_nchw, w_mask, w1, w2):
    """x_nchw: (B, C, H, W); weights in PyTorch conv layout (out, in, 1, 1)."""
    B, C, H, W = x_nchw.shape
    HW = H * W
    hw_pad = ((HW + _LANE - 1) // _LANE) * _LANE

    x = x_nchw.reshape(B, C, HW)
    if hw_pad != HW:
        x = jnp.pad(x, ((0, 0), (0, 0), (0, hw_pad - HW)))

    # Pick an HW tile: lane-aligned, divides hw_pad, small enough for every
    # generation's VMEM, and enough grid steps to hide DMA at small batch.
    tile_hw = min(hw_pad, 2048)
    while hw_pad % tile_hw != 0:
        tile_hw -= _LANE
    while (B * (hw_pad // tile_hw) < 4 and tile_hw > _LANE
           and tile_hw % (2 * _LANE) == 0 and hw_pad % (tile_hw // 2) == 0):
        tile_hw //= 2
    n_tiles = hw_pad // tile_hw

    wm = w_mask.reshape(C, 1).astype(jnp.float32)
    w1m = w1.reshape(C, C).astype(jnp.float32)
    w2m = w2.reshape(C, C).astype(jnp.float32)

    block_bytes = C * tile_hw * x.dtype.itemsize
    vmem_limit = int(min(max(8 * block_bytes + (4 << 20), 16 << 20), 48 << 20))

    kernel = functools.partial(
        _context_kernel, tile_hw=tile_hw, hw_actual=HW,
        need_mask=(hw_pad != HW))

    # Pass 1: per-batch channel-add term y = conv(leaky(conv(context))).
    y = pl.pallas_call(
        kernel,
        out_shape=jax.ShapeDtypeStruct((B, C, 1), jnp.float32),
        grid_spec=pltpu.PrefetchScalarGridSpec(
            num_scalar_prefetch=0,
            grid=(B, n_tiles),
            in_specs=[
                pl.BlockSpec((1, C, tile_hw), lambda b, t: (b, 0, t)),
                pl.BlockSpec((C, 1), lambda b, t: (0, 0)),
                pl.BlockSpec((C, C), lambda b, t: (0, 0)),
                pl.BlockSpec((C, C), lambda b, t: (0, 0)),
            ],
            out_specs=pl.BlockSpec((1, C, 1), lambda b, t: (b, 0, 0)),
            scratch_shapes=[
                pltpu.VMEM((1, 1), jnp.float32),   # running max
                pltpu.VMEM((1, 1), jnp.float32),   # running denom
                pltpu.VMEM((C, 1), jnp.float32),   # running context
            ],
        ),
        compiler_params=pltpu.CompilerParams(
            dimension_semantics=("parallel", "arbitrary"),
            vmem_limit_bytes=vmem_limit),
    )(x, wm, w1m, w2m)

    # Pass 2: stream the residual add x + y (both grid axes independent).
    out = pl.pallas_call(
        _residual_add_kernel,
        out_shape=jax.ShapeDtypeStruct((B, C, hw_pad), x_nchw.dtype),
        grid_spec=pltpu.PrefetchScalarGridSpec(
            num_scalar_prefetch=0,
            grid=(B, n_tiles),
            in_specs=[
                pl.BlockSpec((1, C, tile_hw), lambda b, t: (b, 0, t)),
                pl.BlockSpec((1, C, 1), lambda b, t: (b, 0, 0)),
            ],
            out_specs=pl.BlockSpec((1, C, tile_hw), lambda b, t: (b, 0, t)),
        ),
        compiler_params=pltpu.CompilerParams(
            dimension_semantics=("parallel", "parallel"),
            vmem_limit_bytes=vmem_limit),
    )(x, y)

    if hw_pad != HW:
        out = out[:, :, :HW]
    return out.reshape(B, C, H, W)


def reference_context_block(x, w_mask, w1, w2):
    """Pure-JAX reference mirroring the PyTorch forward exactly."""
    B, C, H, W = x.shape
    HW = H * W
    xf = x.reshape(B, C, HW).astype(jnp.float32)
    wm = w_mask.reshape(1, C)
    logits = jnp.einsum("oc,bcs->bos", wm, xf)                 # (B, 1, HW)
    mask = jax.nn.softmax(logits, axis=2)                      # softmax(dim=2)
    context = jnp.einsum("bcs,bos->bc", xf, mask)              # (B, C)
    y = jnp.einsum("oc,bc->bo", w1.reshape(C, C), context)
    y = jnp.where(y >= 0, y, 0.2 * y)
    y = jnp.einsum("oc,bc->bo", w2.reshape(C, C), y)
    return (xf + y[:, :, None]).reshape(B, C, H, W).astype(x.dtype)


if __name__ == "__main__":
    B, C, H, W = 2, 8, 16, 16  # n_feat = 8

    key = jax.random.PRNGKey(0)
    kx, km, k1, k2 = jax.random.split(key, 4)
    x = jax.random.normal(kx, (B, C, H, W), dtype=jnp.float32)
    # Deterministic synthetic weights (PyTorch conv layout: out, in, kH, kW).
    w_mask = jax.random.normal(km, (1, C, 1, 1), dtype=jnp.float32) * 0.1
    w1 = jax.random.normal(k1, (C, C, 1, 1), dtype=jnp.float32) * 0.1
    w2 = jax.random.normal(k2, (C, C, 1, 1), dtype=jnp.float32) * 0.1

    out = context_block(x, w_mask, w1, w2)
    out = jax.block_until_ready(out)

    ref = reference_context_block(x, w_mask, w1, w2)
    assert out.shape == (B, C, H, W)
    assert out.dtype == x.dtype
    assert jnp.allclose(out, ref, atol=1e-4, rtol=1e-4), "mismatch vs reference"

    print("KERNEL_OK")
</pallas_src>

<mosaic_0001>
module attributes {stable_mosaic.version = 11 : i64} {
  func.func @_context_kernel(%arg0: i32, %arg1: i32, %arg2: memref<1x8x128xf32, #tpu.memory_space<vmem>>, %arg3: memref<8x1xf32, #tpu.memory_space<vmem>>, %arg4: memref<8x8xf32, #tpu.memory_space<vmem>>, %arg5: memref<8x8xf32, #tpu.memory_space<vmem>>, %arg6: memref<1x8x1xf32, #tpu.memory_space<vmem>>, %arg7: memref<1x1xf32, #tpu.memory_space<vmem>>, %arg8: memref<1x1xf32, #tpu.memory_space<vmem>>, %arg9: memref<8x1xf32, #tpu.memory_space<vmem>>) attributes {dimension_semantics = [#tpu.dimension_semantics<parallel>, #tpu.dimension_semantics<arbitrary>], iteration_bounds = array<i64: 2, 2>, scalar_prefetch = 0 : i64, scratch_operands = 3 : i64, tpu.core_type = #tpu.core_type<tc>, window_params = [{transform_indices = @transform_0, window_bounds = array<i64: 1, 8, 128>}, {pipeline_mode = #tpu.pipeline_mode<synchronous>, transform_indices = @transform_1, window_bounds = array<i64: 8, 1>}, {pipeline_mode = #tpu.pipeline_mode<synchronous>, transform_indices = @transform_2, window_bounds = array<i64: 8, 8>}, {pipeline_mode = #tpu.pipeline_mode<synchronous>, transform_indices = @transform_3, window_bounds = array<i64: 8, 8>}, {transform_indices = @transform_4, window_bounds = array<i64: 1, 8, 1>}]} {
    %c0_i32 = arith.constant 0 : i32
    %0 = arith.cmpi eq, %arg1, %c0_i32 : i32
    %1 = arith.extui %0 : i1 to i32
    %c0_i32_0 = arith.constant 0 : i32
    %2 = arith.cmpi ne, %1, %c0_i32_0 : i32
    scf.if %2 {
      %cst_23 = arith.constant -1.000000e+30 : f32
      %39 = vector.broadcast %cst_23 : f32 to vector<1x1xf32>
      %c0_24 = arith.constant 0 : index
      %c0_25 = arith.constant 0 : index
      %40 = vector.load %arg7[%c0_24, %c0_25] : memref<1x1xf32, #tpu.memory_space<vmem>>, vector<1x1xf32>
      tpu.vector_store %arg7[%c0_24, %c0_25], %39 {strides = array<i32>} : memref<1x1xf32, #tpu.memory_space<vmem>>, vector<1x1xf32>,
      %cst_26 = arith.constant 0.000000e+00 : f32
      %41 = vector.broadcast %cst_26 : f32 to vector<1x1xf32>
      %c0_27 = arith.constant 0 : index
      %c0_28 = arith.constant 0 : index
      %42 = vector.load %arg8[%c0_27, %c0_28] : memref<1x1xf32, #tpu.memory_space<vmem>>, vector<1x1xf32>
      tpu.vector_store %arg8[%c0_27, %c0_28], %41 {strides = array<i32>} : memref<1x1xf32, #tpu.memory_space<vmem>>, vector<1x1xf32>,
      %cst_29 = arith.constant 0.000000e+00 : f32
      %43 = vector.broadcast %cst_29 : f32 to vector<8x1xf32>
      %c0_30 = arith.constant 0 : index
      %c0_31 = arith.constant 0 : index
      %44 = vector.load %arg9[%c0_30, %c0_31] : memref<8x1xf32, #tpu.memory_space<vmem>>, vector<8x1xf32>
      tpu.vector_store %arg9[%c0_30, %c0_31], %43 {strides = array<i32>} : memref<8x1xf32, #tpu.memory_space<vmem>>, vector<8x1xf32>,
    } else {
    }
    %c0 = arith.constant 0 : index
    %c0_1 = arith.constant 0 : index
    %c0_2 = arith.constant 0 : index
    %3 = vector.load %arg2[%c0, %c0_1, %c0_2] : memref<1x8x128xf32, #tpu.memory_space<vmem>>, vector<1x8x128xf32>
    %4 = vector.shape_cast %3 : vector<1x8x128xf32> to vector<8x128xf32>
    %c0_3 = arith.constant 0 : index
    %c0_4 = arith.constant 0 : index
    %5 = vector.load %arg3[%c0_3, %c0_4] : memref<8x1xf32, #tpu.memory_space<vmem>>, vector<8x1xf32>
    %6 = vector.broadcast %5 : vector<8x1xf32> to vector<8x128xf32>
    %7 = arith.mulf %6, %4 : vector<8x128xf32>
    %cst = arith.constant dense<0.000000e+00> : vector<128xf32>
    %8 = vector.multi_reduction <add>, %7, %cst [0] : vector<8x128xf32> to vector<128xf32>
    %9 = vector.shape_cast %8 : vector<128xf32> to vector<1x128xf32>
    %cst_5 = arith.constant dense<0xFF800000> : vector<1xf32>
    %10 = vector.multi_reduction <maximumf>, %9, %cst_5 [1] : vector<1x128xf32> to vector<1xf32>
    %11 = vector.shape_cast %10 : vector<1xf32> to vector<1x1xf32>
    %c0_6 = arith.constant 0 : index
    %c0_7 = arith.constant 0 : index
    %12 = vector.load %arg7[%c0_6, %c0_7] : memref<1x1xf32, #tpu.memory_space<vmem>>, vector<1x1xf32>
    %13 = arith.maximumf %12, %11 : vector<1x1xf32>
    %c0_8 = arith.constant 0 : index
    %c0_9 = arith.constant 0 : index
    %14 = vector.load %arg7[%c0_8, %c0_9] : memref<1x1xf32, #tpu.memory_space<vmem>>, vector<1x1xf32>
    %15 = arith.subf %14, %13 : vector<1x1xf32>
    %16 = math.exp %15 : vector<1x1xf32>
    %17 = vector.broadcast %13 : vector<1x1xf32> to vector<1x128xf32>
    %18 = arith.subf %9, %17 : vector<1x128xf32>
    %19 = math.exp %18 : vector<1x128xf32>
    %c0_10 = arith.constant 0 : index
    %c0_11 = arith.constant 0 : index
    %20 = vector.load %arg8[%c0_10, %c0_11] : memref<1x1xf32, #tpu.memory_space<vmem>>, vector<1x1xf32>
    %21 = arith.mulf %16, %20 : vector<1x1xf32>
    %cst_12 = arith.constant dense<0.000000e+00> : vector<1xf32>
    %22 = vector.multi_reduction <add>, %19, %cst_12 [1] : vector<1x128xf32> to vector<1xf32>
    %23 = vector.shape_cast %22 : vector<1xf32> to vector<1x1xf32>
    %24 = arith.addf %21, %23 : vector<1x1xf32>
    %c0_13 = arith.constant 0 : index
    %c0_14 = arith.constant 0 : index
    %25 = vector.load %arg8[%c0_13, %c0_14] : memref<1x1xf32, #tpu.memory_space<vmem>>, vector<1x1xf32>
    tpu.vector_store %arg8[%c0_13, %c0_14], %24 {strides = array<i32>} : memref<1x1xf32, #tpu.memory_space<vmem>>, vector<1x1xf32>,
    %c0_15 = arith.constant 0 : index
    %c0_16 = arith.constant 0 : index
    %26 = vector.load %arg9[%c0_15, %c0_16] : memref<8x1xf32, #tpu.memory_space<vmem>>, vector<8x1xf32>
    %27 = vector.broadcast %16 : vector<1x1xf32> to vector<8x1xf32>
    %28 = arith.mulf %27, %26 : vector<8x1xf32>
    %29 = vector.broadcast %19 : vector<1x128xf32> to vector<8x128xf32>
    %30 = arith.mulf %4, %29 : vector<8x128xf32>
    %cst_17 = arith.constant dense<0.000000e+00> : vector<8xf32>
    %31 = vector.multi_reduction <add>, %30, %cst_17 [1] : vector<8x128xf32> to vector<8xf32>
    %32 = vector.shape_cast %31 : vector<8xf32> to vector<8x1xf32>
    %33 = arith.addf %28, %32 : vector<8x1xf32>
    %c0_18 = arith.constant 0 : index
    %c0_19 = arith.constant 0 : index
    %34 = vector.load %arg9[%c0_18, %c0_19] : memref<8x1xf32, #tpu.memory_space<vmem>>, vector<8x1xf32>
    tpu.vector_store %arg9[%c0_18, %c0_19], %33 {strides = array<i32>} : memref<8x1xf32, #tpu.memory_space<vmem>>, vector<8x1xf32>,
    %c0_20 = arith.constant 0 : index
    %c0_21 = arith.constant 0 : index
    %35 = vector.load %arg7[%c0_20, %c0_21] : memref<1x1xf32, #tpu.memory_space<vmem>>, vector<1x1xf32>
    tpu.vector_store %arg7[%c0_20, %c0_21], %13 {strides = array<i32>} : memref<1x1xf32, #tpu.memory_space<vmem>>, vector<1x1xf32>,
    %c1_i32 = arith.constant 1 : i32
    %36 = arith.cmpi eq, %arg1, %c1_i32 : i32
    %37 = arith.extui %36 : i1 to i32
    %c0_i32_22 = arith.constant 0 : i32
    %38 = arith.cmpi ne, %37, %c0_i32_22 : i32
    scf.if %38 {
      %c0_23 = arith.constant 0 : index
      %c0_24 = arith.constant 0 : index
      %39 = vector.load %arg9[%c0_23, %c0_24] : memref<8x1xf32, #tpu.memory_space<vmem>>, vector<8x1xf32>
      %c0_25 = arith.constant 0 : index
      %c0_26 = arith.constant 0 : index
      %40 = vector.load %arg8[%c0_25, %c0_26] : memref<1x1xf32, #tpu.memory_space<vmem>>, vector<1x1xf32>
      %41 = vector.broadcast %40 : vector<1x1xf32> to vector<8x1xf32>
      %42 = arith.divf %39, %41 : vector<8x1xf32>
      %c0_27 = arith.constant 0 : index
      %c0_28 = arith.constant 0 : index
      %43 = vector.load %arg4[%c0_27, %c0_28] : memref<8x8xf32, #tpu.memory_space<vmem>>, vector<8x8xf32>
      %cst_29 = arith.constant dense<0.000000e+00> : vector<8x1xf32>
      %44 = tpu.matmul %43, %42, %cst_29 {dimension_numbers = #tpu.dot_dimension_numbers<[1], [0], [0], [1], [0, 0, 1, 1], [], []>} : vector<8x8xf32>, vector<8x1xf32>, vector<8x1xf32> -> vector<8x1xf32>
      %cst_30 = arith.constant 0.000000e+00 : f32
      %45 = vector.broadcast %cst_30 : f32 to vector<8x1xf32>
      %46 = arith.cmpf oge, %44, %45 : vector<8x1xf32>
      %cst_31 = arith.constant 2.000000e-01 : f32
      %47 = vector.broadcast %cst_31 : f32 to vector<8x1xf32>
      %48 = arith.mulf %47, %44 : vector<8x1xf32>
      %49 = arith.select %46, %44, %48 : vector<8x1xi1>, vector<8x1xf32>
      %c0_32 = arith.constant 0 : index
      %c0_33 = arith.constant 0 : index
      %50 = vector.load %arg5[%c0_32, %c0_33] : memref<8x8xf32, #tpu.memory_space<vmem>>, vector<8x8xf32>
      %cst_34 = arith.constant dense<0.000000e+00> : vector<8x1xf32>
      %51 = tpu.matmul %50, %49, %cst_34 {dimension_numbers = #tpu.dot_dimension_numbers<[1], [0], [0], [1], [0, 0, 1, 1], [], []>} : vector<8x8xf32>, vector<8x1xf32>, vector<8x1xf32> -> vector<8x1xf32>
      %c0_35 = arith.constant 0 : index
      %c0_36 = arith.constant 0 : index
      %c0_37 = arith.constant 0 : index
      %52 = vector.load %arg6[%c0_35, %c0_36, %c0_37] : memref<1x8x1xf32, #tpu.memory_space<vmem>>, vector<1x8x1xf32>
      %53 = vector.shape_cast %52 : vector<1x8x1xf32> to vector<8x1xf32>
      %54 = vector.shape_cast %51 : vector<8x1xf32> to vector<1x8x1xf32>
      tpu.vector_store %arg6[%c0_35, %c0_36, %c0_37], %54 {strides = array<i32>} : memref<1x8x1xf32, #tpu.memory_space<vmem>>, vector<1x8x1xf32>,
    } else {
    }
    return
  }
  func.func @transform_0(%arg0: i32, %arg1: i32) -> (i32, i32, i32) {
    %c0_i32 = arith.constant 0 : i32
    %c0_i32_0 = arith.constant 0 : i32
    return %arg0, %c0_i32, %arg1 : i32, i32, i32
  }
  func.func @transform_1(%arg0: i32, %arg1: i32) -> (i32, i32) {
    %c0_i32 = arith.constant 0 : i32
    %c0_i32_0 = arith.constant 0 : i32
    %c0_i32_1 = arith.constant 0 : i32
    return %c0_i32, %c0_i32_0 : i32, i32
  }
  func.func @transform_2(%arg0: i32, %arg1: i32) -> (i32, i32) {
    %c0_i32 = arith.constant 0 : i32
    %c0_i32_0 = arith.constant 0 : i32
    %c0_i32_1 = arith.constant 0 : i32
    return %c0_i32, %c0_i32_0 : i32, i32
  }
  func.func @transform_3(%arg0: i32, %arg1: i32) -> (i32, i32) {
    %c0_i32 = arith.constant 0 : i32
    %c0_i32_0 = arith.constant 0 : i32
    %c0_i32_1 = arith.constant 0 : i32
    return %c0_i32, %c0_i32_0 : i32, i32
  }
  func.func @transform_4(%arg0: i32, %arg1: i32) -> (i32, i32, i32) {
    %c0_i32 = arith.constant 0 : i32
    %c0_i32_0 = arith.constant 0 : i32
    %c0_i32_1 = arith.constant 0 : i32
    return %arg0, %c0_i32, %c0_i32_0 : i32, i32, i32
  }
}

</mosaic_0001>

<llo_original>
// kernel: tpu_custom_call.1
$region0: #{tpu_custom_call.1}
  #allocation0 [shape = 'u32[]', space=smem, size = 0x4, offset = 0x4, fixed_abs, tag = 'smem constant byte address 0x4 - core index']
  #allocation1 [shape = 'u32[144,128]{1,0:T(1,128)}', space=vmem, size = 0x12000, scoped, tag = 'internal scratch']
  #allocation2 [shape = 'f32[1,1]{1,0:T(1,128)}', space=vmem, size = 0x200, scoped, tag = 'scratch operand']
  #allocation3 [shape = 'f32[1,1]{1,0:T(1,128)}', space=vmem, size = 0x200, scoped, tag = 'scratch operand']
  #allocation4 [shape = 'f32[8,1]{1,0:T(8,128)}', space=vmem, size = 0x1000, scoped, tag = 'scratch operand']
  %s0 = inlined_call_operand.hbm [shape: f32[2,8,256], index: 0, kind: input, shape index: {}]
  %s1 = inlined_call_operand.vmem [shape: f32[8,1], index: 1, kind: input, shape index: {}]
  %s2 = inlined_call_operand.vmem [shape: f32[8,8], index: 2, kind: input, shape index: {}]
  %s3 = inlined_call_operand.vmem [shape: f32[8,8], index: 3, kind: input, shape index: {}]
  %s4 = inlined_call_operand.vmem [shape: f32[2,8,1], index: 4, kind: output, shape index: {}]
  %s5 = sld [smem:[#allocation0]]
  $region61: #{tpu_custom_call.1} parent=0
    _
  %s7 = ssub.s32 1, %s5
  %s8 = scalar_select 0, %s7, %s5
  $region1: #{tpu_custom_call.1} parent=0
    #allocation5 [shape = 'u8[8192]{0}', space=vmem, size = 0x2000, scoped, tag = 'input window, operand 0']
    #allocation6 [shape = 's32[2]{0}', space=sflag, size = 0x8, scoped, tag = 'scoped memory for tpu_custom_call.1']
    %9 = vsyncpa [#allocation6], 0
    %s10 = scalar_lea.sflag [#allocation6], 1
    %11 = vsyncpa %s10, 0
    loop: start=0, step=1, limit=6
    $region2: #{tpu_custom_call.1} parent=1 // loop_pre_header
      _
    $region3: #{tpu_custom_call.1} parent=1 // loop_header
      %s13 = sphi 0, %s17
      %p14 = scmp.ge.s32.totalorder %s13, 6
      %s20 = sphi 0, %s32
      %s21 = sphi 0, %s28
      %s22 = sphi 0, %s20
      %s23 = sphi 0, %s21
      %s24 = sphi 0, %s22
      %s25 = sphi 0, %s23
      %s37 = sphi 0, %s39
      %s40 = sphi 0, %s37
      %s41 = sphi 0, %s40
      %s57 = sphi 0, %s41
      %s61 = sphi 0, %s61
      %s63 = sphi 0, %s61
      %s64 = sphi 0, %s63
      %s78 = sphi 0, %s64
      %s82 = sphi 0, %s82
      %s84 = sphi 0, %s82
      %s85 = sphi 0, %s84
      %s99 = sphi 0, %s85
      %s103 = sphi 0, %s103
      %s105 = sphi 0, %s103
      %s106 = sphi 0, %s105
      %s120 = sphi 0, %s106
      %s126 = sphi 0, %s128
      %s129 = sphi 0, %s126
      %s130 = sphi 0, %s129
      %s146 = sphi 0, %s130
    $region4: #{tpu_custom_call.1} parent=1 // loop_header_branch
      %16 = sbr.rel (%p14) target = $region8
    $region5: #{tpu_custom_call.1} parent=1 // loop_body
      %s18 = ssub.s32 %s13, 1
      %s19 = ssub.s32 %s13, 2
      %s26 = sadd.s32 1, %s21
      %p27 = scmp.ge.s32.totalorder %s26, 2
      %s28 = scalar_select %p27, 0, %s26
      %s29 = sadd.s32 1, %s20
      %s30 = scalar_select %p27, %s29, %s20
      %p31 = scmp.ge.s32.totalorder %s30, 2
      %s32 = scalar_select %p31, 0, %s30
      %s33 = ssub.s32 %s20, %s32
      %s34 = ssub.s32 %s21, %s28
      %s35 = sor.u32 %s33, %s34
      %p36 = scmp.eq.s32.totalorder %s35, 0
      %s38 = sadd.s32 %s37, 1
      %s39 = scalar_select %p36, %s37, %s38
      %p42 = pneg %p36
      %p43 = scmp.eq.s32.totalorder %s13, 3
      %p44 = por %p42, %p43
      %p45 = scmp.ne.s32.totalorder %s37, %s40
      %p46 = scmp.eq.s32.totalorder %s13, 0
      %p47 = por %p45, %p46
      %p48 = scmp.ne.s32.totalorder %s37, %s40
      %p49 = scmp.eq.s32.totalorder %s18, 3
      %p50 = por %p48, %p49
      %p51 = scmp.ne.s32.totalorder %s40, %s41
      %p52 = scmp.eq.s32.totalorder %s18, 0
      %p53 = por %p51, %p52
      %p54 = scmp.ne.s32.totalorder %s40, %s41
      %p55 = scmp.eq.s32.totalorder %s19, 3
      %p56 = por %p54, %p55
      %p58 = scmp.ne.s32.totalorder %s41, %s57
      %p59 = scmp.eq.s32.totalorder %s19, 0
      %p60 = por %p58, %p59
      %s62 = sadd.s32 %s61, 1
      %p65 = scmp.eq.s32.totalorder %s13, 3
      %p66 = scmp.ne.s32.totalorder %s61, %s63
      %p67 = scmp.eq.s32.totalorder %s13, 0
      %p68 = por %p66, %p67
      %p69 = scmp.ne.s32.totalorder %s61, %s63
      %p70 = scmp.eq.s32.totalorder %s18, 3
      %p71 = por %p69, %p70
      %p72 = scmp.ne.s32.totalorder %s63, %s64
      %p73 = scmp.eq.s32.totalorder %s18, 0
      %p74 = por %p72, %p73
      %p75 = scmp.ne.s32.totalorder %s63, %s64
      %p76 = scmp.eq.s32.totalorder %s19, 3
      %p77 = por %p75, %p76
      %p79 = scmp.ne.s32.totalorder %s64, %s78
      %p80 = scmp.eq.s32.totalorder %s19, 0
      %p81 = por %p79, %p80
      %s83 = sadd.s32 %s82, 1
      %p86 = scmp.eq.s32.totalorder %s13, 3
      %p87 = scmp.ne.s32.totalorder %s82, %s84
      %p88 = scmp.eq.s32.totalorder %s13, 0
      %p89 = por %p87, %p88
      %p90 = scmp.ne.s32.totalorder %s82, %s84
      %p91 = scmp.eq.s32.totalorder %s18, 3
      %p92 = por %p90, %p91
      %p93 = scmp.ne.s32.totalorder %s84, %s85
      %p94 = scmp.eq.s32.totalorder %s18, 0
      %p95 = por %p93, %p94
      %p96 = scmp.ne.s32.totalorder %s84, %s85
      %p97 = scmp.eq.s32.totalorder %s19, 3
      %p98 = por %p96, %p97
      %p100 = scmp.ne.s32.totalorder %s85, %s99
      %p101 = scmp.eq.s32.totalorder %s19, 0
      %p102 = por %p100, %p101
      %s104 = sadd.s32 %s103, 1
      %p107 = scmp.eq.s32.totalorder %s13, 3
      %p108 = scmp.ne.s32.totalorder %s103, %s105
      %p109 = scmp.eq.s32.totalorder %s13, 0
      %p110 = por %p108, %p109
      %p111 = scmp.ne.s32.totalorder %s103, %s105
      %p112 = scmp.eq.s32.totalorder %s18, 3
      %p113 = por %p111, %p112
      %p114 = scmp.ne.s32.totalorder %s105, %s106
      %p115 = scmp.eq.s32.totalorder %s18, 0
      %p116 = por %p114, %p115
      %p117 = scmp.ne.s32.totalorder %s105, %s106
      %p118 = scmp.eq.s32.totalorder %s19, 3
      %p119 = por %p117, %p118
      %p121 = scmp.ne.s32.totalorder %s106, %s120
      %p122 = scmp.eq.s32.totalorder %s19, 0
      %p123 = por %p121, %p122
      %s124 = ssub.s32 %s20, %s32
      %p125 = scmp.eq.s32.totalorder %s124, 0
      %s127 = sadd.s32 %s126, 1
      %s128 = scalar_select %p125, %s126, %s127
      %p131 = pneg %p125
      %p132 = scmp.eq.s32.totalorder %s13, 3
      %p133 = por %p131, %p132
      %p134 = scmp.ne.s32.totalorder %s126, %s129
      %p135 = scmp.eq.s32.totalorder %s13, 0
      %p136 = por %p134, %p135
      %p137 = scmp.ne.s32.totalorder %s126, %s129
      %p138 = scmp.eq.s32.totalorder %s18, 3
      %p139 = por %p137, %p138
      %p140 = scmp.ne.s32.totalorder %s129, %s130
      %p141 = scmp.eq.s32.totalorder %s18, 0
      %p142 = por %p140, %p141
      %p143 = scmp.ne.s32.totalorder %s129, %s130
      %p144 = scmp.eq.s32.totalorder %s19, 3
      %p145 = por %p143, %p144
      %p147 = scmp.ne.s32.totalorder %s130, %s146
      %p148 = scmp.eq.s32.totalorder %s19, 0
      %p149 = por %p147, %p148
      %p150 = scmp.le.s32.totalorder 1, %s13
      %p151 = scmp.lt.s32.totalorder %s13, 5
      %p152 = pnand %p150, %p151
      %p153 = pneg %p152
      // Predicated region
      $region9: #{tpu_custom_call.1} parent=5 // pred_check
        _
      $region10: #{tpu_custom_call.1} parent=5 // pred_check_branch
        %155 = sbr.rel (%p152) target = $region12
      $region11: #{tpu_custom_call.1} parent=5 // pred_region
        %s156 = ssub.s32 %s13, 1
        // Predicated region
        $region13: #{tpu_custom_call.1} parent=11 // pred_check
          %p157 = pneg %p74
        $region14: #{tpu_custom_call.1} parent=11 // pred_check_branch
          %159 = sbr.rel (%p157) target = $region16
        $region15: #{tpu_custom_call.1} parent=11 // pred_region
          _
        $region16: #{tpu_custom_call.1} parent=11 // pred_fallthru
          _
        // Predicated region
        $region17: #{tpu_custom_call.1} parent=11 // pred_check
          %p160 = pneg %p95
        $region18: #{tpu_custom_call.1} parent=11 // pred_check_branch
          %162 = sbr.rel (%p160) target = $region20
        $region19: #{tpu_custom_call.1} parent=11 // pred_region
          _
        $region20: #{tpu_custom_call.1} parent=11 // pred_fallthru
          _
        // Predicated region
        $region21: #{tpu_custom_call.1} parent=11 // pred_check
          %p163 = pneg %p116
        $region22: #{tpu_custom_call.1} parent=11 // pred_check_branch
          %165 = sbr.rel (%p163) target = $region24
        $region23: #{tpu_custom_call.1} parent=11 // pred_region
          _
        $region24: #{tpu_custom_call.1} parent=11 // pred_fallthru
          _
      $region12: #{tpu_custom_call.1} parent=5 // pred_fallthru
        _
      %p166 = scmp.lt.s32.totalorder %s13, 4
      // Predicated region
      $region25: #{tpu_custom_call.1} parent=5 // pred_check
        %p167 = pneg %p166
      $region26: #{tpu_custom_call.1} parent=5 // pred_check_branch
        %169 = sbr.rel (%p167) target = $region28
      $region27: #{tpu_custom_call.1} parent=5 // pred_region
        // Predicated region
        $region29: #{tpu_custom_call.1} parent=27 // pred_check
          %p170 = pneg %p47
        $region30: #{tpu_custom_call.1} parent=27 // pred_check_branch
          %172 = sbr.rel (%p170) target = $region32
        $region31: #{tpu_custom_call.1} parent=27 // pred_region
          %s173 = sand.u32 %s37, 1
          %s174 = scalar_lea.sflag [#allocation6], %s173
          %s175 = sand.u32 %s37, 1
          %s176 = smul.addr %s175, 8
          %s177 = scalar_lea.vmem [#allocation5], %s176
          %s179 = ssub.s32 128, 128
          %180 = vsyncadd %s174, %s179
          %s181 = smul.addr %s20, 2
          %s182 = sadd.s32 %s21, %s181
          %s183 = smul.addr %s182, 128
          %s184 = scalar_lea.hbm %s0, %s183
          %s186 = sshll.u32 %s177, 4
          %s187 = int_to_ptr.vmem [resolvable:$true] %s186
          %189 = dma.hbm_to_vmem [thread:$0]  %s184, 128, %s187, %s174
        $region32: #{tpu_custom_call.1} parent=27 // pred_fallthru
          _
      $region28: #{tpu_custom_call.1} parent=5 // pred_fallthru
        _
      %p190 = scmp.le.s32.totalorder 1, %s13
      %p191 = scmp.lt.s32.totalorder %s13, 5
      %p192 = pnand %p190, %p191
      %p193 = pneg %p192
      // Predicated region
      $region33: #{tpu_custom_call.1} parent=5 // pred_check
        _
      $region34: #{tpu_custom_call.1} parent=5 // pred_check_branch
        %195 = sbr.rel (%p192) target = $region36
      $region35: #{tpu_custom_call.1} parent=5 // pred_region
        %s196 = ssub.s32 %s13, 1
        %s197 = sand.u32 %s40, 1
        %s198 = scalar_lea.sflag [#allocation6], %s197
        %s199 = sand.u32 %s40, 1
        %s200 = smul.addr %s199, 8
        %s201 = scalar_lea.vmem [#allocation5], %s200
        // Predicated region
        $region37: #{tpu_custom_call.1} parent=35 // pred_check
          %p202 = pneg %p53
        $region38: #{tpu_custom_call.1} parent=35 // pred_check_branch
          %204 = sbr.rel (%p202) target = $region40
        $region39: #{tpu_custom_call.1} parent=35 // pred_region
          %205 = dma.done %s198, 128
        $region40: #{tpu_custom_call.1} parent=35 // pred_fallthru
          _
        %s206 = sand.u32 %s40, 1
        %s207 = scalar_lea.sflag [#allocation6], %s206
        %s208 = sand.u32 %s40, 1
        %s209 = smul.addr %s208, 8
        %s210 = scalar_lea.vmem [#allocation5], %s209
        %p211 = pneg %p53
        %p212 = pneg %p50
        %p213 = pneg %p74
        %p214 = pneg %p71
        %p215 = pneg %p95
        %p216 = pneg %p92
        %p217 = pneg %p116
        %p218 = pneg %p113
        %p219 = pneg %p142
        %p220 = pneg %p139
        %p221 = scmp.lt.s32.totalorder %s22, 1
        %s222 = scalar_select %p221, %s22, 1
        %s223 = smul.addr %s222, 8
        %s224 = scalar_lea.vmem %s4, %s223
        %p225 = scmp.lt.s32.totalorder %s22, 1
        %s226 = scalar_select %p225, %s22, 1
        %s227 = smul.addr %s226, 8
        %s228 = scalar_lea.vmem %s4, %s227
        %p229 = scmp.eq.s32.totalorder %s23, 0
        // Predicated region
        $region41: #{tpu_custom_call.1} parent=35 // pred_check
          %p230 = pneg %p229
        $region42: #{tpu_custom_call.1} parent=35 // pred_check_branch
          %232 = sbr.rel (%p230) target = $region44
        $region43: #{tpu_custom_call.1} parent=35 // pred_region
          %vm233 = vcmask 0
          %234 = vst.msk [vmem:[#allocation2] sm:$0x1] %vm233, -1e+30
          %235 = vst.msk [vmem:[#allocation3] sm:$0x1] %vm233, 0.0
          %vm236 = vcmask 7168
          %237 = vst.msk [vmem:[#allocation4] sm:$0xff] %vm236, 0.0
        $region44: #{tpu_custom_call.1} parent=35 // pred_fallthru
          _
        %v238 = vld [vmem:[%s201] sm:$0xff]
        %v239 = vld [vmem:[%s1] sm:$0xff]
        %241 = vset.pattern.permute.xlu0 0
        %242 = vperm.xlu0 %241, %v239
        %v243 = vpop.permute.xlu0 %242
        %v245 = vmul.f32 %v243, %v238
        %v246 = vrot.slane %v245, 4
        %v247 = vadd.f32 %v245, %v246
        %v248 = vrot.slane %v247, 2
        %v249 = vadd.f32 %v247, %v248
        %v250 = vrot.slane %v249, 1
        %v251 = vadd.f32 %v249, %v250
        %252 = vmax.xlane.f32.xlu0 %v251
        %v253 = vpop.xlane.xlu0 %252
        %v254 = vld [vmem:[#allocation2] sm:$0x1]
        %v255 = vmax.f32 %v254, %v253
        %v256 = vsub.f32 %v254, %v255
        %v257 = vmul.f32 %v256, 1.442695
        %v258 = vpow.pop %v257
        %260 = vset.pattern.permute.xlu0 0
        %261 = vperm.xlu0 %260, %v255
        %v262 = vpop.permute.xlu0 %261
        %v264 = vlaneseq
        %v265 = vshrl.u32 %v264, 7
        %v266 = vsub.s32 0, %v265
        %v267 = vrot.slane %v262, %v266
        %v268 = vsub.f32 %v251, %v267
        %v269 = vmul.f32 %v268, 1.442695
        %v270 = vpow.pop %v269
        %v271 = vld [vmem:[#allocation3] sm:$0x1]
        %v272 = vmul.f32 %v258, %v271
        %273 = vadd.xlane.f32.xlu0 %v270
        %v274 = vpop.xlane.xlu0 %273
        %v275 = vadd.f32 %v272, %v274
        %vm276 = vcmask 0
        %277 = vst.msk [vmem:[#allocation3] sm:$0x1] %vm276, %v275
        %v278 = vld [vmem:[#allocation4] sm:$0xff]
        %v280 = vlaneseq
        %v281 = vshrl.u32 %v280, 7
        %v282 = vsub.s32 0, %v281
        %v283 = vrot.slane %v258, %v282
        %v285 = vmul.f32 %v283, %v278
        %v286 = vmul.f32 %v238, %v270
        %287 = vadd.xlane.f32.xlu0 %v286
        %v288 = vpop.xlane.xlu0 %287
        %v289 = vadd.f32 %v285, %v288
        %vm290 = vcmask 7168
        %291 = vst.msk [vmem:[#allocation4] sm:$0xff] %vm290, %v289
        %292 = vst.msk [vmem:[#allocation2] sm:$0x1] %vm276, %v255
        %p293 = scmp.eq.s32.totalorder %s23, 1
        // Predicated region
        $region45: #{tpu_custom_call.1} parent=35 // pred_check
          %p294 = pneg %p293
        $region46: #{tpu_custom_call.1} parent=35 // pred_check_branch
          %296 = sbr.rel (%p294) target = $region48
        $region47: #{tpu_custom_call.1} parent=35 // pred_region
          %v297 = vld [vmem:[#allocation4] sm:$0xff]
          %v298 = vld [vmem:[#allocation3] sm:$0x1]
          %v300 = vlaneseq
          %v301 = vshrl.u32 %v300, 7
          %v302 = vsub.s32 0, %v301
          %v303 = vrot.slane %v298, %v302
          %v305 = vrcp.pop %v303
          %v306 = vmul.f32 %v297, %v305
          %v307 = vld [vmem:[%s2] sm:$0xff]
          %vm308 = vcmask 64512
          %v310 = vsel %vm308, %v307, 0
          %312 = vmatprep.subr.mxu0 0.0
          %313 = vmatpush1.msra.mxu0 %v306
          %314 = vmatprep.subr.mxu0 0.0
          %315 = vmatpush1.msra.mxu0 0.0
          %316 = vmatprep.subr.mxu0 0.0
          %317 = vmatpush1.msra.mxu0 0.0
          %318 = vmatprep.subr.mxu0 0.0
          %319 = vmatpush1.msra.mxu0 0.0
          %320 = vmatprep.subr.mxu0 0.0
          %321 = vmatpush1.msra.mxu0 0.0
          %322 = vmatprep.subr.mxu0 0.0
          %323 = vmatpush1.msra.mxu0 0.0
          %324 = vmatprep.subr.mxu0 0.0
          %325 = vmatpush1.msra.mxu0 0.0
          %326 = vmatprep.subr.mxu0 0.0
          %327 = vmatpush1.msra.mxu0 0.0
          %328 = vmatprep.subr.mxu0 0.0
          %329 = vmatpush1.msra.mxu0 0.0
          %330 = vmatprep.subr.mxu0 0.0
          %331 = vmatpush1.msra.mxu0 0.0
          %332 = vmatprep.subr.mxu0 0.0
          %333 = vmatpush1.msra.mxu0 0.0
          %334 = vmatprep.subr.mxu0 0.0
          %335 = vmatpush1.msra.mxu0 0.0
          %336 = vmatprep.subr.mxu0 0.0
          %337 = vmatpush1.msra.mxu0 0.0
          %338 = vmatprep.subr.mxu0 0.0
          %339 = vmatpush1.msra.mxu0 0.0
          %340 = vmatprep.subr.mxu0 0.0
          %341 = vmatpush1.msra.mxu0 0.0
          %342 = vmatprep.subr.mxu0 0.0
          %343 = vmatpush1.msra.mxu0 0.0
          %344 = vmatprep.subr.mxu0 0.0
          %345 = vmatpush1.msra.mxu0 0.0
          %346 = vmatprep.subr.mxu0 0.0
          %347 = vmatpush1.msra.mxu0 0.0
          %348 = vmatprep.subr.mxu0 0.0
          %349 = vmatpush1.msra.mxu0 0.0
          %350 = vmatprep.subr.mxu0 0.0
          %351 = vmatpush1.msra.mxu0 0.0
          %352 = vmatprep.subr.mxu0 0.0
          %353 = vmatpush1.msra.mxu0 0.0
          %354 = vmatprep.subr.mxu0 0.0
          %355 = vmatpush1.msra.mxu0 0.0
          %356 = vmatprep.subr.mxu0 0.0
          %357 = vmatpush1.msra.mxu0 0.0
          %358 = vmatprep.subr.mxu0 0.0
          %359 = vmatpush1.msra.mxu0 0.0
          %360 = vmatprep.subr.mxu0 0.0
          %361 = vmatpush1.msra.mxu0 0.0
          %362 = vmatprep.subr.mxu0 0.0
          %363 = vmatpush1.msra.mxu0 0.0
          %364 = vmatprep.subr.mxu0 0.0
          %365 = vmatpush1.msra.mxu0 0.0
          %366 = vmatprep.subr.mxu0 0.0
          %367 = vmatpush1.msra.mxu0 0.0
          %368 = vmatprep.subr.mxu0 0.0
          %369 = vmatpush1.msra.mxu0 0.0
          %370 = vmatprep.subr.mxu0 0.0
          %371 = vmatpush1.msra.mxu0 0.0
          %372 = vmatprep.subr.mxu0 0.0
          %373 = vmatpush1.msra.mxu0 0.0
          %374 = vmatprep.subr.mxu0 0.0
          %375 = vmatpush1.msra.mxu0 0.0
          %376 = vmatprep.mubr.f32.mxu0 0.0
          %377 = vmatmul.mubr.f32.gmra.mrb[0].mxu0 %v310
          %v378 = vpop.f32.mrb[0].mxu0
          %v379 = vadd.f32 0.0, %v378
          %v380 = vpop.f32.mrb[0].mxu0
          %381 = vdwg.mxu0
          %vm382 = vcmp.ge.f32.partialorder %v379, 0.0
          %v383 = vmul.f32 %v379, 0.2
          %v384 = vsel %vm382, %v379, %v383
          %v385 = vld [vmem:[%s3] sm:$0xff]
          %v387 = vsel %vm308, %v385, 0
          %389 = vmatprep.subr.mxu0 0.0
          %390 = vmatpush1.msra.mxu0 %v384
          %391 = vmatprep.subr.mxu0 0.0
          %392 = vmatpush1.msra.mxu0 0.0
          %393 = vmatprep.subr.mxu0 0.0
          %394 = vmatpush1.msra.mxu0 0.0
          %395 = vmatprep.subr.mxu0 0.0
          %396 = vmatpush1.msra.mxu0 0.0
          %397 = vmatprep.subr.mxu0 0.0
          %398 = vmatpush1.msra.mxu0 0.0
          %399 = vmatprep.subr.mxu0 0.0
          %400 = vmatpush1.msra.mxu0 0.0
          %401 = vmatprep.subr.mxu0 0.0
          %402 = vmatpush1.msra.mxu0 0.0
          %403 = vmatprep.subr.mxu0 0.0
          %404 = vmatpush1.msra.mxu0 0.0
          %405 = vmatprep.subr.mxu0 0.0
          %406 = vmatpush1.msra.mxu0 0.0
          %407 = vmatprep.subr.mxu0 0.0
          %408 = vmatpush1.msra.mxu0 0.0
          %409 = vmatprep.subr.mxu0 0.0
          %410 = vmatpush1.msra.mxu0 0.0
          %411 = vmatprep.subr.mxu0 0.0
          %412 = vmatpush1.msra.mxu0 0.0
          %413 = vmatprep.subr.mxu0 0.0
          %414 = vmatpush1.msra.mxu0 0.0
          %415 = vmatprep.subr.mxu0 0.0
          %416 = vmatpush1.msra.mxu0 0.0
          %417 = vmatprep.subr.mxu0 0.0
          %418 = vmatpush1.msra.mxu0 0.0
          %419 = vmatprep.subr.mxu0 0.0
          %420 = vmatpush1.msra.mxu0 0.0
          %421 = vmatprep.subr.mxu0 0.0
          %422 = vmatpush1.msra.mxu0 0.0
          %423 = vmatprep.subr.mxu0 0.0
          %424 = vmatpush1.msra.mxu0 0.0
          %425 = vmatprep.subr.mxu0 0.0
          %426 = vmatpush1.msra.mxu0 0.0
          %427 = vmatprep.subr.mxu0 0.0
          %428 = vmatpush1.msra.mxu0 0.0
          %429 = vmatprep.subr.mxu0 0.0
          %430 = vmatpush1.msra.mxu0 0.0
          %431 = vmatprep.subr.mxu0 0.0
          %432 = vmatpush1.msra.mxu0 0.0
          %433 = vmatprep.subr.mxu0 0.0
          %434 = vmatpush1.msra.mxu0 0.0
          %435 = vmatprep.subr.mxu0 0.0
          %436 = vmatpush1.msra.mxu0 0.0
          %437 = vmatprep.subr.mxu0 0.0
          %438 = vmatpush1.msra.mxu0 0.0
          %439 = vmatprep.subr.mxu0 0.0
          %440 = vmatpush1.msra.mxu0 0.0
          %441 = vmatprep.subr.mxu0 0.0
          %442 = vmatpush1.msra.mxu0 0.0
          %443 = vmatprep.subr.mxu0 0.0
          %444 = vmatpush1.msra.mxu0 0.0
          %445 = vmatprep.subr.mxu0 0.0
          %446 = vmatpush1.msra.mxu0 0.0
          %447 = vmatprep.subr.mxu0 0.0
          %448 = vmatpush1.msra.mxu0 0.0
          %449 = vmatprep.subr.mxu0 0.0
          %450 = vmatpush1.msra.mxu0 0.0
          %451 = vmatprep.subr.mxu0 0.0
          %452 = vmatpush1.msra.mxu0 0.0
          %453 = vmatprep.mubr.f32.mxu0 0.0
          %454 = vmatmul.mubr.f32.gmra.mrb[0].mxu0 %v387
          %v455 = vpop.f32.mrb[0].mxu0
          %v456 = vadd.f32 0.0, %v455
          %v457 = vpop.f32.mrb[0].mxu0
          %458 = vdwg.mxu0
          %459 = vst.msk [vmem:[%s228] sm:$0xff] %vm290, %v456
        $region48: #{tpu_custom_call.1} parent=35 // pred_fallthru
          _
        %p460 = scmp.lt.s32.totalorder %s22, 1
        %s461 = scalar_select %p460, %s22, 1
        %s462 = smul.addr %s461, 8
        %s463 = scalar_lea.vmem %s4, %s462
        // Predicated region
        $region49: #{tpu_custom_call.1} parent=35 // pred_check
          %p464 = pneg %p139
        $region50: #{tpu_custom_call.1} parent=35 // pred_check_branch
          %466 = sbr.rel (%p464) target = $region52
        $region51: #{tpu_custom_call.1} parent=35 // pred_region
          _
        $region52: #{tpu_custom_call.1} parent=35 // pred_fallthru
          _
      $region36: #{tpu_custom_call.1} parent=5 // pred_fallthru
        _
      %p467 = scmp.le.s32.totalorder 2, %s13
      // Predicated region
      $region53: #{tpu_custom_call.1} parent=5 // pred_check
        %p468 = pneg %p467
      $region54: #{tpu_custom_call.1} parent=5 // pred_check_branch
        %470 = sbr.rel (%p468) target = $region56
      $region55: #{tpu_custom_call.1} parent=5 // pred_region
        %s471 = ssub.s32 %s13, 2
        // Predicated region
        $region57: #{tpu_custom_call.1} parent=55 // pred_check
          %p472 = pneg %p145
        $region58: #{tpu_custom_call.1} parent=55 // pred_check_branch
          %474 = sbr.rel (%p472) target = $region60
        $region59: #{tpu_custom_call.1} parent=55 // pred_region
          %p475 = scmp.lt.s32.totalorder %s24, 1
          %s476 = scalar_select %p475, %s24, 1
          %s477 = smul.addr %s476, 8
          %s478 = scalar_lea.vmem %s4, %s477
        $region60: #{tpu_custom_call.1} parent=55 // pred_fallthru
          _
      $region56: #{tpu_custom_call.1} parent=5 // pred_fallthru
        _
    $region6: #{tpu_custom_call.1} parent=1 // loop_footer
      %s17 = sadd.s32 1, %s13
    $region7: #{tpu_custom_call.1} parent=1 // loop_footer_branch
      %12 = sbr.rel target = $region3
    $region8: #{tpu_custom_call.1} parent=1 // loop_exit
      _
    %479 = vsyncpa [#allocation6], 1
    %s480 = scalar_lea.sflag [#allocation6], 1
    %481 = vsyncpa %s480, 1

</llo_original>
